<compile_context>
chip_gen: v7x
topology: tpu7x:2x2x1
jax: 0.10.0
libtpu: 0.0.40
codegen_flags: <defaults>
</compile_context>

<pallas_src>
import functools

import jax
import jax.numpy as jnp
from jax.experimental import pallas as pl
from jax.experimental.pallas import tpu as pltpu

# ------------------------------- config --------------------------------------
HIDDEN = 32      # config.hidden_size
INTER = 64       # config.intermediate_size
BATCH = 2
SEQ = 8
LN_EPS = 1e-12   # config.layer_norm_eps
LANE = 128       # TPU lane width


def _round_up(x, m):
    return (x + m - 1) // m * m


# ------------------------------ Pallas kernel ---------------------------------
def bert_output_kernel(x_ref, w_ref, r_ref, p_ref, o_ref, *, eps, n_valid):
    """Fused: out = LayerNorm(x @ W + b + residual)   (dropout = identity).

    x_ref : (tm, Kp)  bf16  activation tile (lane padded K)
    w_ref : (Kp, Hp)  bf16  full weight, VMEM-resident (constant block index)
    r_ref : (tm, Hp)  f32   residual (input_states) tile
    p_ref : (8,  Hp)  f32   packed params: row0=bias, row1=gamma, row2=beta
    o_ref : (tm, Hp)  f32   output tile (lane-dense, full-128 store)
    """
    # Dense: single full-K contraction on the MXU, f32 accumulation.
    y = jnp.dot(x_ref[...], w_ref[...], preferred_element_type=jnp.float32)

    params = p_ref[...]
    bias = params[0:1, :]
    gamma = params[1:2, :]
    beta = params[2:3, :]

    # dropout is identity (inference); add bias + residual in f32.
    y = y + bias + r_ref[...]

    hp = o_ref.shape[-1]
    if n_valid == hp:
        # No lane padding (real BERT: hidden 768/1024) -> plain LayerNorm.
        mu = jnp.mean(y, axis=-1, keepdims=True)
        xc = y - mu
        var = jnp.mean(xc * xc, axis=-1, keepdims=True)
    else:
        # Masked LayerNorm over the real hidden columns only.
        lane = jax.lax.broadcasted_iota(jnp.int32, y.shape, dimension=1)
        valid = lane < n_valid
        inv_n = 1.0 / n_valid
        y = jnp.where(valid, y, 0.0)
        mu = jnp.sum(y, axis=-1, keepdims=True) * inv_n
        xc = jnp.where(valid, y - mu, 0.0)
        var = jnp.sum(xc * xc, axis=-1, keepdims=True) * inv_n

    out = xc * jax.lax.rsqrt(var + eps) * gamma + beta
    o_ref[...] = out.astype(o_ref.dtype)


# --------------------------- parameter preparation ----------------------------
def prepare_bert_output_params(w, b, gamma, beta, *, compute_dtype=jnp.bfloat16):
    """Pad/cast parameters ONCE (load-time in a real model).

    w: (INTER, HIDDEN) = torch nn.Linear(inter, hidden).weight.T
    Returns (w_packed (Kp, Hp) bf16, param_slab (8, Hp) f32).
    """
    K, H = w.shape
    Kp = _round_up(K, LANE)
    Hp = _round_up(H, LANE)
    w_packed = jnp.pad(w.astype(jnp.float32),
                       ((0, Kp - K), (0, Hp - H))).astype(compute_dtype)
    slab = jnp.zeros((8, Hp), jnp.float32)
    slab = slab.at[0, :H].set(b.astype(jnp.float32))
    slab = slab.at[1, :H].set(gamma.astype(jnp.float32))
    slab = slab.at[2, :H].set(beta.astype(jnp.float32))
    return w_packed, slab


# --------------------------------- wrapper -------------------------------------
def bert_output(hidden_states, input_states, w_packed, param_slab,
                *, eps=LN_EPS, tm=512, compute_dtype=jnp.bfloat16):
    """hidden_states: (..., INTER); input_states: (..., HIDDEN)."""
    Kp, Hp = w_packed.shape
    lead_shape = input_states.shape
    H = lead_shape[-1]
    K = hidden_states.shape[-1]

    x = hidden_states.reshape(-1, K)
    r = input_states.reshape(-1, H)
    M = x.shape[0]

    # M tile: as large as possible (up to `tm`), multiple of 8 sublanes.
    tm = max(8, _round_up(min(tm, M), 8))
    Mp = _round_up(M, tm)

    # Activation pads are no-ops when shapes are already lane/sublane aligned.
    if (Mp, Kp) != (M, K):
        x = jnp.pad(x, ((0, Mp - M), (0, Kp - K)))
    x = x.astype(compute_dtype)
    if (Mp, Hp) != (M, H):
        r = jnp.pad(r, ((0, Mp - M), (0, Hp - H)))
    r = r.astype(jnp.float32)

    # VMEM budget: double-buffered streams + resident weight + param slab,
    # with 2x headroom; fits comfortably inside v7x's 64 MiB at BERT sizes.
    bpe = jnp.dtype(compute_dtype).itemsize
    need = (2 * (tm * Kp * bpe + tm * Hp * 4 + tm * Hp * 4)
            + 2 * Kp * Hp * bpe + 2 * 8 * Hp * 4)
    vmem_limit = int(min(100 * 2**20, max(32 * 2**20, 2 * need)))

    grid = (Mp // tm,)
    out = pl.pallas_call(
        functools.partial(bert_output_kernel, eps=eps, n_valid=H),
        out_shape=jax.ShapeDtypeStruct((Mp, Hp), jnp.float32),
        grid=grid,
        in_specs=[
            pl.BlockSpec((tm, Kp), lambda i: (i, 0)),   # x           (streamed)
            pl.BlockSpec((Kp, Hp), lambda i: (0, 0)),   # W           (resident)
            pl.BlockSpec((tm, Hp), lambda i: (i, 0)),   # residual    (streamed)
            pl.BlockSpec((8, Hp), lambda i: (0, 0)),    # bias/gamma/beta slab
        ],
        out_specs=pl.BlockSpec((tm, Hp), lambda i: (i, 0)),
        compiler_params=pltpu.CompilerParams(
            dimension_semantics=("parallel",),
            vmem_limit_bytes=vmem_limit),
    )(x, w_packed, r, param_slab)

    return out[:M, :H].reshape(lead_shape)


# ------------------------------------ main ------------------------------------
if __name__ == "__main__":
    key = jax.random.PRNGKey(0)
    k1, k2, k3, k4, k5, k6 = jax.random.split(key, 6)

    hidden_states = jax.random.normal(k1, (BATCH, SEQ, INTER), dtype=jnp.float32)
    input_states = jax.random.normal(k2, (BATCH, SEQ, HIDDEN), dtype=jnp.float32)
    # nn.Linear(INTER, HIDDEN): torch weight is (HIDDEN, INTER); store W = weight.T
    w = 0.02 * jax.random.normal(k3, (INTER, HIDDEN), dtype=jnp.float32)
    b = 0.02 * jax.random.normal(k4, (HIDDEN,), dtype=jnp.float32)
    gamma = 1.0 + 0.1 * jax.random.normal(k5, (HIDDEN,), dtype=jnp.float32)
    beta = 0.1 * jax.random.normal(k6, (HIDDEN,), dtype=jnp.float32)

    # Load-time parameter packing (done once per model in practice).
    w_packed, param_slab = prepare_bert_output_params(w, b, gamma, beta)

    out = bert_output(hidden_states, input_states, w_packed, param_slab)
    out = jax.block_until_ready(out)

    # Pure-JAX f32 reference of the module's forward.
    y = hidden_states.reshape(-1, INTER) @ w + b + input_states.reshape(-1, HIDDEN)
    mu = jnp.mean(y, axis=-1, keepdims=True)
    xc = y - mu
    var = jnp.mean(xc * xc, axis=-1, keepdims=True)
    ref = (xc * jax.lax.rsqrt(var + LN_EPS) * gamma + beta).reshape(BATCH, SEQ, HIDDEN)

    assert out.shape == (BATCH, SEQ, HIDDEN)
    assert bool(jnp.all(jnp.isfinite(out)))
    # Tolerance relaxed vs the f32 reference because the dense matmul operands
    # are fed to the MXU in bf16 (accumulation and LayerNorm remain f32).
    assert bool(jnp.allclose(out, ref, atol=1e-2, rtol=1e-2))
    print("KERNEL_OK")
</pallas_src>

<mosaic_0001>
module attributes {stable_mosaic.version = 11 : i64} {
  func.func @bert_output_kernel(%arg0: i32, %arg1: memref<16x128xbf16, #tpu.memory_space<vmem>>, %arg2: memref<128x128xbf16, #tpu.memory_space<vmem>>, %arg3: memref<16x128xf32, #tpu.memory_space<vmem>>, %arg4: memref<8x128xf32, #tpu.memory_space<vmem>>, %arg5: memref<16x128xf32, #tpu.memory_space<vmem>>) attributes {dimension_semantics = [#tpu.dimension_semantics<parallel>], iteration_bounds = array<i64: 1>, scalar_prefetch = 0 : i64, scratch_operands = 0 : i64, tpu.core_type = #tpu.core_type<tc>, window_params = [{transform_indices = @transform_0, window_bounds = array<i64: 16, 128>}, {pipeline_mode = #tpu.pipeline_mode<synchronous>, transform_indices = @transform_1, window_bounds = array<i64: 128, 128>}, {transform_indices = @transform_2, window_bounds = array<i64: 16, 128>}, {pipeline_mode = #tpu.pipeline_mode<synchronous>, transform_indices = @transform_3, window_bounds = array<i64: 8, 128>}, {transform_indices = @transform_4, window_bounds = array<i64: 16, 128>}]} {
    %c0 = arith.constant 0 : index
    %c0_0 = arith.constant 0 : index
    %0 = vector.load %arg1[%c0, %c0_0] : memref<16x128xbf16, #tpu.memory_space<vmem>>, vector<16x128xbf16>
    %c0_1 = arith.constant 0 : index
    %c0_2 = arith.constant 0 : index
    %1 = vector.load %arg2[%c0_1, %c0_2] : memref<128x128xbf16, #tpu.memory_space<vmem>>, vector<128x128xbf16>
    %cst = arith.constant dense<0.000000e+00> : vector<16x128xf32>
    %2 = tpu.matmul %0, %1, %cst {dimension_numbers = #tpu.dot_dimension_numbers<[1], [0], [0], [1], [0, 0, 1, 1], [], []>} : vector<16x128xbf16>, vector<128x128xbf16>, vector<16x128xf32> -> vector<16x128xf32>
    %c0_3 = arith.constant 0 : index
    %c0_4 = arith.constant 0 : index
    %3 = vector.load %arg4[%c0_3, %c0_4] : memref<8x128xf32, #tpu.memory_space<vmem>>, vector<8x128xf32>
    %4 = vector.extract_strided_slice %3 {offsets = [0, 0], sizes = [1, 128], strides = [1, 1]} : vector<8x128xf32> to vector<1x128xf32>
    %5 = vector.extract_strided_slice %3 {offsets = [1, 0], sizes = [1, 128], strides = [1, 1]} : vector<8x128xf32> to vector<1x128xf32>
    %6 = vector.extract_strided_slice %3 {offsets = [2, 0], sizes = [1, 128], strides = [1, 1]} : vector<8x128xf32> to vector<1x128xf32>
    %7 = vector.broadcast %4 : vector<1x128xf32> to vector<16x128xf32>
    %8 = arith.addf %2, %7 : vector<16x128xf32>
    %c0_5 = arith.constant 0 : index
    %c0_6 = arith.constant 0 : index
    %9 = vector.load %arg3[%c0_5, %c0_6] : memref<16x128xf32, #tpu.memory_space<vmem>>, vector<16x128xf32>
    %10 = arith.addf %8, %9 : vector<16x128xf32>
    %11 = tpu.iota {dimensions = array<i32: 1>} : vector<16x128xi32>
    %c32_i32 = arith.constant 32 : i32
    %12 = vector.broadcast %c32_i32 : i32 to vector<16x128xi32>
    %13 = arith.cmpi slt, %11, %12 : vector<16x128xi32>
    %cst_7 = arith.constant 0.000000e+00 : f32
    %14 = vector.broadcast %cst_7 : f32 to vector<16x128xf32>
    %15 = arith.select %13, %10, %14 : vector<16x128xi1>, vector<16x128xf32>
    %cst_8 = arith.constant dense<0.000000e+00> : vector<16xf32>
    %16 = vector.multi_reduction <add>, %15, %cst_8 [1] : vector<16x128xf32> to vector<16xf32>
    %17 = vector.shape_cast %16 : vector<16xf32> to vector<16x1xf32>
    %cst_9 = arith.constant 3.125000e-02 : f32
    %18 = vector.broadcast %cst_9 : f32 to vector<16x1xf32>
    %19 = arith.mulf %17, %18 : vector<16x1xf32>
    %20 = vector.broadcast %19 : vector<16x1xf32> to vector<16x128xf32>
    %21 = arith.subf %15, %20 : vector<16x128xf32>
    %cst_10 = arith.constant 0.000000e+00 : f32
    %22 = vector.broadcast %cst_10 : f32 to vector<16x128xf32>
    %23 = arith.select %13, %21, %22 : vector<16x128xi1>, vector<16x128xf32>
    %24 = arith.mulf %23, %23 : vector<16x128xf32>
    %cst_11 = arith.constant dense<0.000000e+00> : vector<16xf32>
    %25 = vector.multi_reduction <add>, %24, %cst_11 [1] : vector<16x128xf32> to vector<16xf32>
    %26 = vector.shape_cast %25 : vector<16xf32> to vector<16x1xf32>
    %cst_12 = arith.constant 3.125000e-02 : f32
    %27 = vector.broadcast %cst_12 : f32 to vector<16x1xf32>
    %28 = arith.mulf %26, %27 : vector<16x1xf32>
    %cst_13 = arith.constant 9.99999996E-13 : f32
    %29 = vector.broadcast %cst_13 : f32 to vector<16x1xf32>
    %30 = arith.addf %28, %29 : vector<16x1xf32>
    %31 = math.rsqrt %30 : vector<16x1xf32>
    %32 = vector.broadcast %31 : vector<16x1xf32> to vector<16x128xf32>
    %33 = arith.mulf %23, %32 : vector<16x128xf32>
    %34 = vector.broadcast %5 : vector<1x128xf32> to vector<16x128xf32>
    %35 = arith.mulf %33, %34 : vector<16x128xf32>
    %36 = vector.broadcast %6 : vector<1x128xf32> to vector<16x128xf32>
    %37 = arith.addf %35, %36 : vector<16x128xf32>
    %c0_14 = arith.constant 0 : index
    %c0_15 = arith.constant 0 : index
    %38 = vector.load %arg5[%c0_14, %c0_15] : memref<16x128xf32, #tpu.memory_space<vmem>>, vector<16x128xf32>
    tpu.vector_store %arg5[%c0_14, %c0_15], %37 {strides = array<i32>} : memref<16x128xf32, #tpu.memory_space<vmem>>, vector<16x128xf32>,
    return
  }
  func.func @transform_0(%arg0: i32) -> (i32, i32) {
    %c0_i32 = arith.constant 0 : i32
    %c0_i32_0 = arith.constant 0 : i32
    return %arg0, %c0_i32 : i32, i32
  }
  func.func @transform_1(%arg0: i32) -> (i32, i32) {
    %c0_i32 = arith.constant 0 : i32
    %c0_i32_0 = arith.constant 0 : i32
    %c0_i32_1 = arith.constant 0 : i32
    return %c0_i32, %c0_i32_0 : i32, i32
  }
  func.func @transform_2(%arg0: i32) -> (i32, i32) {
    %c0_i32 = arith.constant 0 : i32
    %c0_i32_0 = arith.constant 0 : i32
    return %arg0, %c0_i32 : i32, i32
  }
  func.func @transform_3(%arg0: i32) -> (i32, i32) {
    %c0_i32 = arith.constant 0 : i32
    %c0_i32_0 = arith.constant 0 : i32
    %c0_i32_1 = arith.constant 0 : i32
    return %c0_i32, %c0_i32_0 : i32, i32
  }
  func.func @transform_4(%arg0: i32) -> (i32, i32) {
    %c0_i32 = arith.constant 0 : i32
    %c0_i32_0 = arith.constant 0 : i32
    return %arg0, %c0_i32 : i32, i32
  }
}

</mosaic_0001>

<llo_original>
// kernel: tpu_custom_call.1
$region0: #{tpu_custom_call.1}
  #allocation0 [shape = 'u32[]', space=smem, size = 0x4, offset = 0x4, fixed_abs, tag = 'smem constant byte address 0x4 - core index']
  #allocation1 [shape = 'u32[144,128]{1,0:T(1,128)}', space=vmem, size = 0x12000, scoped, tag = 'internal scratch']
  %s0 = inlined_call_operand.hbm [shape: bf16[16,128], index: 0, kind: input, shape index: {}]
  %s1 = inlined_call_operand.hbm [shape: bf16[128,128], index: 1, kind: input, shape index: {}]
  %s2 = inlined_call_operand.hbm [shape: f32[16,128], index: 2, kind: input, shape index: {}]
  %s3 = inlined_call_operand.vmem [shape: f32[8,128], index: 3, kind: input, shape index: {}]
  %s4 = inlined_call_operand.hbm [shape: f32[16,128], index: 4, kind: output, shape index: {}]
  %s5 = sld [smem:[#allocation0]]
  $region38: #{tpu_custom_call.1} parent=0
    _
  %s7 = ssub.s32 1, %s5
  %s8 = scalar_select 0, %s7, %s5
  $region1: #{tpu_custom_call.1} parent=0
    #allocation2 [shape = 'u8[4096]{0}', space=vmem, size = 0x1000, scoped, tag = 'input window, operand 0, single buffered']
    #allocation3 [shape = 's32[1]{0}', space=sflag, size = 0x4, scoped, tag = 'scoped memory for tpu_custom_call.1']
    #allocation4 [shape = 's32[1]{0}', space=sflag, size = 0x4, scoped, tag = 'scoped memory for tpu_custom_call.1']
    #allocation5 [shape = 'u8[32768]{0}', space=vmem, size = 0x8000, scoped, tag = 'input window, operand 1, single buffered']
    #allocation6 [shape = 's32[1]{0}', space=sflag, size = 0x4, scoped, tag = 'scoped memory for tpu_custom_call.1']
    #allocation7 [shape = 'u8[8192]{0}', space=vmem, size = 0x2000, scoped, tag = 'input window, operand 2, single buffered']
    #allocation8 [shape = 'u8[8192]{0}', space=vmem, size = 0x2000, scoped, tag = 'output window, operand 0, single buffered']
    %9 = vsyncpa [#allocation3], 0
    %10 = vsyncpa [#allocation6], 0
    %11 = vsyncpa [#allocation4], 0
    // Predicated region
    $region2: #{tpu_custom_call.1} parent=1 // pred_check
      _
    $region3: #{tpu_custom_call.1} parent=1 // pred_check_branch
      %13 = sbr.rel (0) target = $region5
    $region4: #{tpu_custom_call.1} parent=1 // pred_region
      %s15 = ssub.s32 128, 128
      %16 = vsyncadd [#allocation3], %s15
      %s17 = sshll.u32 [#allocation2], 4
      %s18 = int_to_ptr.vmem [resolvable:$true] %s17
      %23 = dma.hbm_to_vmem [thread:$0]  %s0, 128, %s18, [#allocation3], 64, 64, 4
    $region5: #{tpu_custom_call.1} parent=1 // pred_fallthru
      _
    // Predicated region
    $region6: #{tpu_custom_call.1} parent=1 // pred_check
      _
    $region7: #{tpu_custom_call.1} parent=1 // pred_check_branch
      %25 = sbr.rel (0) target = $region9
    $region8: #{tpu_custom_call.1} parent=1 // pred_region
      %s27 = ssub.s32 1024, 1024
      %28 = vsyncadd [#allocation6], %s27
      %s29 = sshll.u32 [#allocation5], 4
      %s30 = int_to_ptr.vmem [resolvable:$true] %s29
      %35 = dma.hbm_to_vmem [thread:$0]  %s1, 1024, %s30, [#allocation6], 64, 64, 4
    $region9: #{tpu_custom_call.1} parent=1 // pred_fallthru
      _
    // Predicated region
    $region10: #{tpu_custom_call.1} parent=1 // pred_check
      _
    $region11: #{tpu_custom_call.1} parent=1 // pred_check_branch
      %37 = sbr.rel (0) target = $region13
    $region12: #{tpu_custom_call.1} parent=1 // pred_region
      %s39 = ssub.s32 256, 256
      %40 = vsyncadd [#allocation6], %s39
      %s41 = sshll.u32 [#allocation7], 4
      %s42 = int_to_ptr.vmem [resolvable:$true] %s41
      %47 = dma.hbm_to_vmem [thread:$0]  %s2, 256, %s42, [#allocation6], 128, 128, 8
    $region13: #{tpu_custom_call.1} parent=1 // pred_fallthru
      _
    // Predicated region
    $region14: #{tpu_custom_call.1} parent=1 // pred_check
      _
    $region15: #{tpu_custom_call.1} parent=1 // pred_check_branch
      %49 = sbr.rel (0) target = $region17
    $region16: #{tpu_custom_call.1} parent=1 // pred_region
      _
    $region17: #{tpu_custom_call.1} parent=1 // pred_fallthru
      _
    // Predicated region
    $region18: #{tpu_custom_call.1} parent=1 // pred_check
      _
    $region19: #{tpu_custom_call.1} parent=1 // pred_check_branch
      %51 = sbr.rel (0) target = $region21
    $region20: #{tpu_custom_call.1} parent=1 // pred_region
      %52 = dma.done [#allocation3], 128
    $region21: #{tpu_custom_call.1} parent=1 // pred_fallthru
      _
    // Predicated region
    $region22: #{tpu_custom_call.1} parent=1 // pred_check
      _
    $region23: #{tpu_custom_call.1} parent=1 // pred_check_branch
      %54 = sbr.rel (0) target = $region25
    $region24: #{tpu_custom_call.1} parent=1 // pred_region
      %55 = dma.done [#allocation6], 1024
    $region25: #{tpu_custom_call.1} parent=1 // pred_fallthru
      _
    // Predicated region
    $region26: #{tpu_custom_call.1} parent=1 // pred_check
      _
    $region27: #{tpu_custom_call.1} parent=1 // pred_check_branch
      %57 = sbr.rel (0) target = $region29
    $region28: #{tpu_custom_call.1} parent=1 // pred_region
      %58 = dma.done [#allocation6], 256
    $region29: #{tpu_custom_call.1} parent=1 // pred_fallthru
      _
    %v60 = vld [vmem:[#allocation2] sm:$0xf]
    %v61 = vld [vmem:[#allocation2 + $0x4] sm:$0xf]
    %v62 = vld [vmem:[#allocation5] sm:$0xf]
    %v63 = vld [vmem:[#allocation5 + $0x4] sm:$0xf]
    %v64 = vld [vmem:[#allocation5 + $0x8] sm:$0xf]
    %v65 = vld [vmem:[#allocation5 + $0xc] sm:$0xf]
    %v66 = vld [vmem:[#allocation5 + $0x10] sm:$0xf]
    %v67 = vld [vmem:[#allocation5 + $0x14] sm:$0xf]
    %v68 = vld [vmem:[#allocation5 + $0x18] sm:$0xf]
    %v69 = vld [vmem:[#allocation5 + $0x1c] sm:$0xf]
    %v70 = vld [vmem:[#allocation5 + $0x20] sm:$0xf]
    %v71 = vld [vmem:[#allocation5 + $0x24] sm:$0xf]
    %v72 = vld [vmem:[#allocation5 + $0x28] sm:$0xf]
    %v73 = vld [vmem:[#allocation5 + $0x2c] sm:$0xf]
    %v74 = vld [vmem:[#allocation5 + $0x30] sm:$0xf]
    %v75 = vld [vmem:[#allocation5 + $0x34] sm:$0xf]
    %v76 = vld [vmem:[#allocation5 + $0x38] sm:$0xf]
    %v77 = vld [vmem:[#allocation5 + $0x3c] sm:$0xf]
    %v78 = vld [vmem:[%s3] sm:$0xff]
    %v79 = vlaneseq
    %v80 = vshrl.u32 %v79, 7
    %v81 = vsub.s32 0, %v80
    %v82 = vrot.slane %v78, %v81
    %v85 = vunpack.c.l.b16 %v60
    %v86 = vunpack.c.l.b16 %v61
    %v87 = vpack.c.b16 %v86, %v85
    %v105 = vunpack.c.l.b16 %v62
    %v106 = vunpack.c.l.b16 %v63
    %v107 = vunpack.c.l.b16 %v64
    %v108 = vunpack.c.l.b16 %v65
    %v109 = vunpack.c.l.b16 %v66
    %v110 = vunpack.c.l.b16 %v67
    %v111 = vunpack.c.l.b16 %v68
    %v112 = vunpack.c.l.b16 %v69
    %v113 = vunpack.c.l.b16 %v70
    %v114 = vunpack.c.l.b16 %v71
    %v115 = vunpack.c.l.b16 %v72
    %v116 = vunpack.c.l.b16 %v73
    %v117 = vunpack.c.l.b16 %v74
    %v118 = vunpack.c.l.b16 %v75
    %v119 = vunpack.c.l.b16 %v76
    %v120 = vunpack.c.l.b16 %v77
    %v121 = vpack.c.b16 %v106, %v105
    %v122 = vpack.c.b16 %v108, %v107
    %v123 = vpack.c.b16 %v110, %v109
    %v124 = vpack.c.b16 %v112, %v111
    %v125 = vpack.c.b16 %v114, %v113
    %v126 = vpack.c.b16 %v116, %v115
    %v127 = vpack.c.b16 %v118, %v117
    %v128 = vpack.c.b16 %v120, %v119
    %137 = vmatprep.subr.bf16.mxu0 0
    %138 = vmatpush1.bf16.msra.mxu0 %v121
    %139 = vmatprep.subr.bf16.mxu0 0
    %140 = vmatpush1.bf16.msra.mxu0 %v122
    %141 = vmatprep.subr.bf16.mxu0 0
    %142 = vmatpush1.bf16.msra.mxu0 %v123
    %143 = vmatprep.subr.bf16.mxu0 0
    %144 = vmatpush1.bf16.msra.mxu0 %v124
    %145 = vmatprep.subr.bf16.mxu0 0
    %146 = vmatpush1.bf16.msra.mxu0 %v125
    %147 = vmatprep.subr.bf16.mxu0 0
    %148 = vmatpush1.bf16.msra.mxu0 %v126
    %149 = vmatprep.subr.bf16.mxu0 0
    %150 = vmatpush1.bf16.msra.mxu0 %v127
    %151 = vmatprep.subr.bf16.mxu0 0
    %152 = vmatpush1.bf16.msra.mxu0 %v128
    %153 = vmatprep.subr.bf16.mxu0 0
    %154 = vmatpush1.bf16.msra.mxu0 0
    %155 = vmatprep.subr.bf16.mxu0 0
    %156 = vmatpush1.bf16.msra.mxu0 0
    %157 = vmatprep.subr.bf16.mxu0 0
    %158 = vmatpush1.bf16.msra.mxu0 0
    %159 = vmatprep.subr.bf16.mxu0 0
    %160 = vmatpush1.bf16.msra.mxu0 0
    %161 = vmatprep.subr.bf16.mxu0 0
    %162 = vmatpush1.bf16.msra.mxu0 0
    %163 = vmatprep.subr.bf16.mxu0 0
    %164 = vmatpush1.bf16.msra.mxu0 0
    %165 = vmatprep.subr.bf16.mxu0 0
    %166 = vmatpush1.bf16.msra.mxu0 0
    %167 = vmatprep.subr.bf16.mxu0 0
    %168 = vmatpush1.bf16.msra.mxu0 0
    %169 = vmatprep.mubr.bf16.mxu0 0
    %170 = vmatmul.mubr.bf16.gmra.mrb[0].mxu0 %v87
    %v171 = vpop.f32.mrb[0].mxu0
    %v172 = vadd.f32 %v82, %v171
    %v173 = vpop.f32.mrb[0].mxu0
    %v174 = vpop.f32.mrb[0].mxu0
    %v175 = vadd.f32 %v82, %v174
    %v176 = vpop.f32.mrb[0].mxu0
    %177 = vdwg.mxu0
    %v178 = vld [vmem:[#allocation7] sm:$0xff]
    %v179 = vld [vmem:[#allocation7 + $0x8] sm:$0xff]
    %v180 = vadd.f32 %v172, %v178
    %v181 = vadd.f32 %v175, %v179
    %v182 = vlaneseq
    %v183 = vand.u32 %v182, 127
    %vm184 = vcmp.lt.s32.totalorder %v183, 32
    %v185 = vsel %vm184, %v180, 0.0
    %v186 = vsel %vm184, %v181, 0.0
    %187 = vadd.xlane.f32.xlu0 %v185
    %v188 = vpop.xlane.xlu0 %187
    %189 = vadd.xlane.f32.xlu0 %v186
    %v190 = vpop.xlane.xlu0 %189
    %v191 = vmul.f32 %v188, 0.03125
    %v192 = vmul.f32 %v190, 0.03125
    %v193 = vsub.f32 %v185, %v191
    %v194 = vsub.f32 %v186, %v192
    %v195 = vsel %vm184, %v193, 0.0
    %v196 = vsel %vm184, %v194, 0.0
    %v197 = vmul.f32 %v195, %v195
    %v198 = vmul.f32 %v196, %v196
    %199 = vadd.xlane.f32.xlu0 %v197
    %v200 = vpop.xlane.xlu0 %199
    %201 = vadd.xlane.f32.xlu0 %v198
    %v202 = vpop.xlane.xlu0 %201
    %v203 = vmul.f32 %v200, 0.03125
    %v204 = vmul.f32 %v202, 0.03125
    %v205 = vadd.f32 %v203, 1e-12
    %v206 = vadd.f32 %v204, 1e-12
    %v207 = vrsqrt.pop %v205
    %v208 = vrsqrt.pop %v206
    %v209 = vmul.f32 %v195, %v207
    %v210 = vmul.f32 %v196, %v208
    %v211 = vlaneseq
    %v212 = vshrl.u32 %v211, 7
    %v213 = vsub.s32 1, %v212
    %v214 = vrot.slane %v78, %v213
    %v215 = vmul.f32 %v209, %v214
    %v216 = vmul.f32 %v210, %v214
    %v217 = vlaneseq
    %v218 = vshrl.u32 %v217, 7
    %v219 = vsub.s32 2, %v218
    %v220 = vrot.slane %v78, %v219
    %v221 = vadd.f32 %v215, %v220
    %v222 = vadd.f32 %v216, %v220
    %223 = vst [vmem:[#allocation8] sm:$0xff] %v221
    %224 = vst [vmem:[#allocation8 + $0x8] sm:$0xff] %v222
    // Predicated region
    $region30: #{tpu_custom_call.1} parent=1 // pred_check
      _
    $region31: #{tpu_custom_call.1} parent=1 // pred_check_branch
      %226 = sbr.rel (0) target = $region33
    $region32: #{tpu_custom_call.1} parent=1 // pred_region
      %s228 = ssub.s32 256, 256
      %229 = vsyncadd [#allocation4], %s228
      %s230 = sshll.u32 [#allocation8], 4
      %s231 = int_to_ptr.vmem [resolvable:$true] %s230
      %236 = dma.vmem_to_hbm [thread:$0]  %s231, 256, %s4, [#allocation4], 128, 128, 8
    $region33: #{tpu_custom_call.1} parent=1 // pred_fallthru
      _
    // Predicated region
    $region34: #{tpu_custom_call.1} parent=1 // pred_check
      _
    $region35: #{tpu_custom_call.1} parent=1 // pred_check_branch
      %238 = sbr.rel (0) target = $region37
    $region36: #{tpu_custom_call.1} parent=1 // pred_region
      %239 = dma.done [#allocation4], 256
    $region37: #{tpu_custom_call.1} parent=1 // pred_fallthru
      _
    %240 = vsyncpa [#allocation3], 1
    %241 = vsyncpa [#allocation6], 1
    %242 = vsyncpa [#allocation4], 1

</llo_original>
